<compile_context>
chip_gen: v6e
topology: v6e:2x2x1
jax: 0.10.0
libtpu: 0.0.40
codegen_flags: <defaults>
</compile_context>

<pallas_src>
import jax
import jax.numpy as jnp
from jax.experimental import pallas as pl

_LANE = 128


def _const_eval_pass_kernel(v1_ref, x_ref, y_ref, o_ref):
    # v1 = operator(c1, c2) was constant-folded in the wrapper (ConstEvalPass);
    # the kernel only performs the runtime adds:
    #   v2 = add(x, y);  v3 = add(v1, v2)   (v1 broadcasts over the batch dim)
    o_ref[...] = v1_ref[...] + (x_ref[...] + y_ref[...])


@jax.jit
def model_const_eval_pass(c1: jax.Array, c2: jax.Array,
                          x: jax.Array, y: jax.Array) -> jax.Array:
    assert x.shape == y.shape and x.dtype == y.dtype
    assert c1.shape == c2.shape and c1.dtype == x.dtype
    assert c1.shape[0] == 1 and c1.shape[1:] == x.shape[1:], \
        "constants carry the microbatch-reduced shape"

    n = x.shape[0]
    feat = x.size // n                      # C*H*W
    assert feat % _LANE == 0, (
        "feature size must be lane-aligned; if a non-aligned shape is ever "
        "needed, pad the flattened feature dim to a multiple of 128 and slice "
        "the output instead of asserting")
    rows = feat // _LANE                    # sublane-dense row count per batch

    # ConstEvalPass fold: the constant-only op is evaluated outside the kernel
    # (one tiny fused XLA add on `feat` elements), dropping an operand/DMA.
    v1 = (c1 + c2).reshape(1, rows, _LANE)

    # Lane- AND sublane-dense slabs: last two dims are (feat/128, 128), so the
    # trailing (8,128) tiles are fully occupied and stores are unmasked vst.
    x3 = x.reshape(n, rows, _LANE)
    y3 = y.reshape(n, rows, _LANE)

    # Single full-array block per operand (~4-8 KiB each) -> no grid, no
    # per-step pipeline overhead, one DMA in per input, one DMA out.
    # NOTE(scaling): at this size the pallas_call entry + DMA setup dominates
    # (~1-2 us vs ~12 KiB of HBM traffic); on a hot path, fuse with neighbors
    # or let XLA fuse the adds. If reused at real sizes: add a 1-D row grid
    # marked "parallel" via pltpu.CompilerParams(dimension_semantics=...) so
    # v7x's two TensorCores split the work (no-op on v5e/v6e), and size the
    # row tile from the scoped-VMEM budget with three double-buffered f32
    # streams at feat=1024: ~512 rows on v5e (16 MiB default scope),
    # ~1024-2048 rows on v6e (32 MiB), and <=1024 rows on v7x (64 MiB
    # physical, 32 MiB default scope) — NOT 4096 rows, which would exceed
    # v7x's physical VMEM once double-buffered.
    out3 = pl.pallas_call(
        _const_eval_pass_kernel,
        out_shape=jax.ShapeDtypeStruct((n, rows, _LANE), x.dtype),
        in_specs=[
            pl.BlockSpec((1, rows, _LANE), lambda: (0, 0, 0)),   # folded const
            pl.BlockSpec((n, rows, _LANE), lambda: (0, 0, 0)),   # x
            pl.BlockSpec((n, rows, _LANE), lambda: (0, 0, 0)),   # y
        ],
        out_specs=pl.BlockSpec((n, rows, _LANE), lambda: (0, 0, 0)),
        # Output may reuse x's HBM buffer; effective when the caller donates x,
        # otherwise XLA inserts a copy (correct either way).
        input_output_aliases={1: 0},
    )(v1, x3, y3)

    return out3.reshape(x.shape)


if __name__ == "__main__":
    key = jax.random.PRNGKey(0)
    kc1, kc2, kx, ky = jax.random.split(key, 4)

    # NCHW inputs, small shapes consistent with the eltwise-binary test module.
    shape = (2, 4, 16, 16)
    const_shape = (1,) + shape[1:]          # ShapeUtils.reduce_microbatch_size

    # Module constants: torch.rand(*const_shape) - 0.5 -> uniform in [-0.5, 0.5)
    c1 = jax.random.uniform(kc1, const_shape, dtype=jnp.float32) - 0.5
    c2 = jax.random.uniform(kc2, const_shape, dtype=jnp.float32) - 0.5
    x = jax.random.normal(kx, shape, dtype=jnp.float32)
    y = jax.random.normal(ky, shape, dtype=jnp.float32)

    # Reference computed first (defensive w.r.t. the output/input aliasing hint).
    ref = (c1 + c2) + (x + y)

    out = jax.block_until_ready(model_const_eval_pass(c1, c2, x, y))

    assert out.shape == x.shape
    assert jnp.allclose(out, ref, atol=1e-6, rtol=1e-6)

    print("KERNEL_OK")
</pallas_src>

<mosaic_0001>
module attributes {stable_mosaic.version = 11 : i64} {
  func.func @_const_eval_pass_kernel(%arg0: memref<1x8x128xf32, #tpu.memory_space<vmem>>, %arg1: memref<2x8x128xf32, #tpu.memory_space<vmem>>, %arg2: memref<2x8x128xf32, #tpu.memory_space<vmem>>, %arg3: memref<2x8x128xf32, #tpu.memory_space<vmem>>) attributes {dimension_semantics = [], scalar_prefetch = 0 : i64, scratch_operands = 0 : i64, tpu.core_type = #tpu.core_type<tc>} {
    %c0 = arith.constant 0 : index
    %c0_0 = arith.constant 0 : index
    %c0_1 = arith.constant 0 : index
    %0 = vector.load %arg0[%c0, %c0_0, %c0_1] : memref<1x8x128xf32, #tpu.memory_space<vmem>>, vector<1x8x128xf32>
    %c0_2 = arith.constant 0 : index
    %c0_3 = arith.constant 0 : index
    %c0_4 = arith.constant 0 : index
    %1 = vector.load %arg1[%c0_2, %c0_3, %c0_4] : memref<2x8x128xf32, #tpu.memory_space<vmem>>, vector<2x8x128xf32>
    %c0_5 = arith.constant 0 : index
    %c0_6 = arith.constant 0 : index
    %c0_7 = arith.constant 0 : index
    %2 = vector.load %arg2[%c0_5, %c0_6, %c0_7] : memref<2x8x128xf32, #tpu.memory_space<vmem>>, vector<2x8x128xf32>
    %3 = arith.addf %1, %2 : vector<2x8x128xf32>
    %4 = vector.broadcast %0 : vector<1x8x128xf32> to vector<2x8x128xf32>
    %5 = arith.addf %4, %3 : vector<2x8x128xf32>
    %c0_8 = arith.constant 0 : index
    %c0_9 = arith.constant 0 : index
    %c0_10 = arith.constant 0 : index
    %6 = vector.load %arg3[%c0_8, %c0_9, %c0_10] : memref<2x8x128xf32, #tpu.memory_space<vmem>>, vector<2x8x128xf32>
    tpu.vector_store %arg3[%c0_8, %c0_9, %c0_10], %5 {strides = array<i32>} : memref<2x8x128xf32, #tpu.memory_space<vmem>>, vector<2x8x128xf32>,
    return
  }
}

</mosaic_0001>

<llo_original>
// kernel: model_const_eval_pass.1
$region0: #{model_const_eval_pass.1}
  #allocation0 [shape = 'u32[]', space=smem, size = 0x4, offset = 0x4, fixed_abs, tag = 'smem constant byte address 0x4 - core index']
  #allocation1 [shape = 'u32[144,128]{1,0:T(1,128)}', space=vmem, size = 0x12000, scoped, tag = 'internal scratch']
  %s0 = inlined_call_operand.vmem [shape: f32[1,8,128], index: 0, kind: input, shape index: {}]
  %s1 = inlined_call_operand.vmem [shape: f32[2,8,128], index: 1, kind: input, shape index: {}, may-alias: {1,3}]
  %s2 = inlined_call_operand.vmem [shape: f32[2,8,128], index: 2, kind: input, shape index: {}]
  %s3 = inlined_call_operand.vmem [shape: f32[2,8,128], index: 3, kind: output, shape index: {}, may-alias: {1,3}]
  %s4 = sld [smem:[#allocation0]]
  $region22: #{model_const_eval_pass.1} parent=0
    _
  %s6 = ssub.s32 1, %s4
  %s7 = scalar_select 0, %s6, %s4
  // Predicated region
  $region2: #{model_const_eval_pass.1} parent=0 // pred_check
    _
  $region3: #{model_const_eval_pass.1} parent=0 // pred_check_branch
    %9 = sbr.rel (0) target = $region5
  $region4: #{model_const_eval_pass.1} parent=0 // pred_region
    _
  $region5: #{model_const_eval_pass.1} parent=0 // pred_fallthru
    _
  // Predicated region
  $region6: #{model_const_eval_pass.1} parent=0 // pred_check
    _
  $region7: #{model_const_eval_pass.1} parent=0 // pred_check_branch
    %11 = sbr.rel (0) target = $region9
  $region8: #{model_const_eval_pass.1} parent=0 // pred_region
    _
  $region9: #{model_const_eval_pass.1} parent=0 // pred_fallthru
    _
  // Predicated region
  $region10: #{model_const_eval_pass.1} parent=0 // pred_check
    _
  $region11: #{model_const_eval_pass.1} parent=0 // pred_check_branch
    %13 = sbr.rel (0) target = $region13
  $region12: #{model_const_eval_pass.1} parent=0 // pred_region
    _
  $region13: #{model_const_eval_pass.1} parent=0 // pred_fallthru
    _
  %v14 = vld [vmem:[%s0] sm:$0xff]
  %v15 = vld [vmem:[%s1] sm:$0xff]
  %v16 = vld [vmem:[%s1 + $0x8] sm:$0xff]
  %v17 = vld [vmem:[%s2] sm:$0xff]
  %v18 = vld [vmem:[%s2 + $0x8] sm:$0xff]
  %v19 = vadd.f32 %v15, %v17
  %v20 = vadd.f32 %v16, %v18
  %v21 = vadd.f32 %v14, %v19
  %v22 = vadd.f32 %v14, %v20
  %23 = vst [vmem:[%s3] sm:$0xff] %v21
  %24 = vst [vmem:[%s3 + $0x8] sm:$0xff] %v22
  // Predicated region
  $region14: #{model_const_eval_pass.1} parent=0 // pred_check
    _
  $region15: #{model_const_eval_pass.1} parent=0 // pred_check_branch
    %26 = sbr.rel (0) target = $region17
  $region16: #{model_const_eval_pass.1} parent=0 // pred_region
    _
  $region17: #{model_const_eval_pass.1} parent=0 // pred_fallthru
    _
  // Predicated region
  $region18: #{model_const_eval_pass.1} parent=0 // pred_check
    _
  $region19: #{model_const_eval_pass.1} parent=0 // pred_check_branch
    %28 = sbr.rel (0) target = $region21
  $region20: #{model_const_eval_pass.1} parent=0 // pred_region
    _
  $region21: #{model_const_eval_pass.1} parent=0 // pred_fallthru
    _

</llo_original>
